<compile_context>
chip_gen: v6e
topology: v6e:2x2x1
jax: 0.10.0
libtpu: 0.0.40
codegen_flags: <defaults>
</compile_context>

<pallas_src>
import functools

import jax
import jax.numpy as jnp
from jax import lax
from jax.experimental import pallas as pl
from jax.experimental.pallas import tpu as pltpu


def _shift_kernel(shift_ref, x_ref, o_ref, *, pad, nb, h):
    """Shifted/clamped crop of `nb` images per grid step.

    shift_ref : SMEM int32 (2*N,); (shift_ref[2b], shift_ref[2b+1]) = (sx, sy)
    x_ref     : VMEM (nb, C, Hp, W) input block (H padded up to a multiple of 8)
    o_ref     : VMEM (nb, C, H, W) output block
    """
    _, C, Hp, W = x_ref.shape
    H = h
    # One-hot operands + f32 accumulation keep both matmuls exact.  bf16
    # inputs use the native bf16 MXU path for the (large) column gather.
    cdt = jnp.bfloat16 if x_ref.dtype == jnp.bfloat16 else jnp.float32
    base = pl.program_id(0) * nb

    # Iotas hoisted out of the per-image loop (built once per grid step).
    cw = lax.broadcasted_iota(jnp.int32, (W, W), 0)       # w index (CmT rows)
    cj = lax.broadcasted_iota(jnp.int32, (W, W), 1)       # j index (CmT cols)
    if (H, Hp) == (W, W):
        ri, ra = cw, cj                                    # H == W, no padding
    else:
        ri = lax.broadcasted_iota(jnp.int32, (H, Hp), 0)   # i index (R rows)
        ra = lax.broadcasted_iota(jnp.int32, (H, Hp), 1)   # a index (R cols)

    @pl.loop(0, nb, unroll=(nb <= 8))
    def _(bl):
        gb = base + bl
        sx = shift_ref[2 * gb]          # width  shift (grid[..., 0])
        sy = shift_ref[2 * gb + 1]      # height shift (grid[..., 1])

        # Column-selection (pre-transposed) CmT: (W, W)
        #   CmT[w, j] = 1 iff w == clip(j + sx - pad, 0, W-1)
        CmT = (cw == jnp.clip(cj + (sx - pad), 0, W - 1)).astype(cdt)
        # Row-selection R: (H, Hp); R[i, a] = 1 iff a == clip(i + sy - pad, 0, H-1).
        # Kept in f32: the row matmul accumulates in f32 anyway and this avoids
        # an f32->bf16 round trip (extra pack/unpack work on v5e's f32-only VPU).
        R = (ra == jnp.clip(ri + (sy - pad), 0, H - 1)).astype(jnp.float32)

        # Column gather fused over all channels: one (C*Hp, W) @ (W, W).
        # Hp % 8 == 0, so the reshape is sublane-tile aligned (no relayout).
        xb = x_ref[bl].astype(cdt)                              # (C, Hp, W)
        cg = jnp.dot(xb.reshape(C * Hp, W), CmT,
                     preferred_element_type=jnp.float32)        # (C*Hp, W) f32

        # Row gather per channel, each result stored immediately (no stack, so
        # at most one (H, W) f32 result is live at a time).
        for ch in range(C):
            blk = cg[ch * Hp:(ch + 1) * Hp, :]                  # aligned static slice
            row = jnp.dot(R, blk, preferred_element_type=jnp.float32)
            o_ref[bl, ch] = row.astype(o_ref.dtype)


def _pick_nb(n, bytes_per_image, block_n):
    """Images per grid step: as large as the VMEM budget allows, preferring an
    even number of grid steps (clean megacore split on v7x's two TCs)."""
    # Double-buffered in+out blocks must stay within ~40 MiB (v7x: 64 MiB/TC).
    cap = max(1, (40 * 2 ** 20) // (4 * bytes_per_image))
    max_nb = max(1, min(n, block_n, cap))
    divs = [d for d in range(1, max_nb + 1) if n % d == 0]
    even = [d for d in divs if (n // d) % 2 == 0]
    return max(even) if even else max(divs)


def random_shifts_aug(x, shifts, pad, block_n=32):
    """x: (N, C, H, W) float; shifts: (N, 2) int32 in [0, 2*pad];
    shifts[:, 0] = width shift (sx), shifts[:, 1] = height shift (sy)."""
    n, c, h, w = x.shape
    assert h == w, "RandomShiftsAug requires square images"

    # Pad H (sublane dim) to a multiple of 8 so the in-kernel (C, Hp, W) ->
    # (C*Hp, W) reshape is tile-aligned.  Padded rows are never selected by
    # the one-hot row gather, so their contents are irrelevant.
    hp = -(-h // 8) * 8
    x_in = x if hp == h else jnp.pad(x, ((0, 0), (0, 0), (0, hp - h), (0, 0)))

    itemsize = x.dtype.itemsize
    nb = _pick_nb(n, c * hp * w * itemsize, block_n)
    # TODO(synk): a prime N > block_n degenerates to nb=1 (correct but slow).

    vmem_need = 2 * nb * c * (hp + h) * w * itemsize        # double-buffered in+out
    vmem_limit = int(min(56 * 2 ** 20, max(32 * 2 ** 20, 2 * vmem_need)))

    shifts_flat = shifts.reshape(-1).astype(jnp.int32)      # (2N,) -> tiny SMEM pad

    kernel = functools.partial(_shift_kernel, pad=pad, nb=nb, h=h)
    cost = pl.CostEstimate(
        flops=2 * n * c * w * (hp * w + h * hp),
        transcendentals=0,
        bytes_accessed=n * c * (hp + h) * w * itemsize + shifts_flat.size * 4,
    )
    return pl.pallas_call(
        kernel,
        out_shape=jax.ShapeDtypeStruct((n, c, h, w), x.dtype),
        grid_spec=pltpu.PrefetchScalarGridSpec(
            num_scalar_prefetch=1,                          # shifts -> SMEM
            grid=(n // nb,),
            in_specs=[pl.BlockSpec((nb, c, hp, w), lambda g, s: (g, 0, 0, 0))],
            out_specs=pl.BlockSpec((nb, c, h, w), lambda g, s: (g, 0, 0, 0)),
        ),
        compiler_params=pltpu.CompilerParams(
            dimension_semantics=("parallel",),
            vmem_limit_bytes=vmem_limit,
        ),
        cost_estimate=cost,
    )(shifts_flat, x_in)


def _reference(x, shifts, pad):
    """Pure-JAX reference: replicate pad + integer crop (== the torch forward)."""
    n, _, h, w = x.shape
    xp = jnp.pad(x, ((0, 0), (0, 0), (pad, pad), (pad, pad)), mode="edge")
    outs = []
    for b in range(n):
        sx = int(shifts[b, 0])
        sy = int(shifts[b, 1])
        outs.append(xp[b, :, sy:sy + h, sx:sx + w])
    return jnp.stack(outs, axis=0)


if __name__ == "__main__":
    PAD = 4
    N, C, H, W = 2, 4, 16, 16

    key = jax.random.PRNGKey(0)
    kx, ks = jax.random.split(key)
    x = jax.random.normal(kx, (N, C, H, W), dtype=jnp.float32)
    # torch.randint(0, 2*pad + 1, size=(n, 1, 1, 2)) -> per-image (sx, sy)
    shifts = jax.random.randint(ks, (N, 2), 0, 2 * PAD + 1, dtype=jnp.int32)

    out = random_shifts_aug(x, shifts, PAD)
    out = jax.block_until_ready(out)

    ref = _reference(x, shifts, PAD)
    assert out.shape == (N, C, H, W) and out.dtype == x.dtype
    assert jnp.allclose(out, ref, atol=1e-6), "mismatch vs reference"

    print("KERNEL_OK")
</pallas_src>

<mosaic_0001>
module attributes {stable_mosaic.version = 11 : i64} {
  func.func @_shift_kernel(%arg0: i32, %arg1: memref<4xi32, #tpu.memory_space<smem>>, %arg2: memref<1x4x16x16xf32, #tpu.memory_space<vmem>>, %arg3: memref<1x4x16x16xf32, #tpu.memory_space<vmem>>) attributes {dimension_semantics = [#tpu.dimension_semantics<parallel>], iteration_bounds = array<i64: 2>, scalar_prefetch = 1 : i64, scratch_operands = 0 : i64, tpu.core_type = #tpu.core_type<tc>, window_params = [{transform_indices = @transform_0, window_bounds = array<i64: 1, 4, 16, 16>}, {transform_indices = @transform_1, window_bounds = array<i64: 1, 4, 16, 16>}]} {
    %c1_i32 = arith.constant 1 : i32
    %0 = arith.muli %arg0, %c1_i32 : i32
    %1 = tpu.iota {dimensions = array<i32: 0>} : vector<16x16xi32>
    %2 = tpu.iota {dimensions = array<i32: 1>} : vector<16x16xi32>
    %c0_i32 = arith.constant 0 : i32
    %c1_i32_0 = arith.constant 1 : i32
    %3 = arith.muli %c0_i32, %c1_i32_0 : i32
    %c0_i32_1 = arith.constant 0 : i32
    %4 = arith.addi %c0_i32_1, %3 : i32
    %5 = arith.addi %0, %4 : i32
    %c2_i32 = arith.constant 2 : i32
    %6 = arith.muli %c2_i32, %5 : i32
    %7 = arith.index_cast %6 : i32 to index
    %8 = memref.load %arg1[%7] : memref<4xi32, #tpu.memory_space<smem>>
    %c2_i32_2 = arith.constant 2 : i32
    %9 = arith.muli %c2_i32_2, %5 : i32
    %c1_i32_3 = arith.constant 1 : i32
    %10 = arith.addi %9, %c1_i32_3 : i32
    %11 = arith.index_cast %10 : i32 to index
    %12 = memref.load %arg1[%11] : memref<4xi32, #tpu.memory_space<smem>>
    %c4_i32 = arith.constant 4 : i32
    %13 = arith.subi %8, %c4_i32 : i32
    %14 = vector.broadcast %13 : i32 to vector<16x16xi32>
    %15 = arith.addi %2, %14 : vector<16x16xi32>
    %c0_i32_4 = arith.constant 0 : i32
    %c15_i32 = arith.constant 15 : i32
    %16 = vector.broadcast %c0_i32_4 : i32 to vector<16x16xi32>
    %17 = arith.maxsi %16, %15 : vector<16x16xi32>
    %18 = vector.broadcast %c15_i32 : i32 to vector<16x16xi32>
    %19 = arith.minsi %18, %17 : vector<16x16xi32>
    %20 = arith.cmpi eq, %1, %19 : vector<16x16xi32>
    %21 = arith.extui %20 : vector<16x16xi1> to vector<16x16xi32>
    %22 = arith.sitofp %21 : vector<16x16xi32> to vector<16x16xf32>
    %c4_i32_5 = arith.constant 4 : i32
    %23 = arith.subi %12, %c4_i32_5 : i32
    %24 = vector.broadcast %23 : i32 to vector<16x16xi32>
    %25 = arith.addi %1, %24 : vector<16x16xi32>
    %c0_i32_6 = arith.constant 0 : i32
    %c15_i32_7 = arith.constant 15 : i32
    %26 = vector.broadcast %c0_i32_6 : i32 to vector<16x16xi32>
    %27 = arith.maxsi %26, %25 : vector<16x16xi32>
    %28 = vector.broadcast %c15_i32_7 : i32 to vector<16x16xi32>
    %29 = arith.minsi %28, %27 : vector<16x16xi32>
    %30 = arith.cmpi eq, %2, %29 : vector<16x16xi32>
    %31 = arith.extui %30 : vector<16x16xi1> to vector<16x16xi32>
    %32 = arith.sitofp %31 : vector<16x16xi32> to vector<16x16xf32>
    %33 = arith.index_cast %4 : i32 to index
    %c0 = arith.constant 0 : index
    %c0_8 = arith.constant 0 : index
    %c0_9 = arith.constant 0 : index
    %34 = vector.load %arg2[%33, %c0, %c0_8, %c0_9] : memref<1x4x16x16xf32, #tpu.memory_space<vmem>>, vector<1x4x16x16xf32>
    %35 = vector.shape_cast %34 : vector<1x4x16x16xf32> to vector<4x16x16xf32>
    %36 = vector.shape_cast %35 : vector<4x16x16xf32> to vector<64x16xf32>
    %cst = arith.constant dense<0.000000e+00> : vector<64x16xf32>
    %37 = tpu.matmul %36, %22, %cst {dimension_numbers = #tpu.dot_dimension_numbers<[1], [0], [0], [1], [0, 0, 1, 1], [], []>} : vector<64x16xf32>, vector<16x16xf32>, vector<64x16xf32> -> vector<64x16xf32>
    %38 = vector.extract_strided_slice %37 {offsets = [0, 0], sizes = [16, 16], strides = [1, 1]} : vector<64x16xf32> to vector<16x16xf32>
    %cst_10 = arith.constant dense<0.000000e+00> : vector<16x16xf32>
    %39 = tpu.matmul %32, %38, %cst_10 {dimension_numbers = #tpu.dot_dimension_numbers<[1], [0], [0], [1], [0, 0, 1, 1], [], []>} : vector<16x16xf32>, vector<16x16xf32>, vector<16x16xf32> -> vector<16x16xf32>
    %40 = arith.index_cast %4 : i32 to index
    %c0_11 = arith.constant 0 : index
    %c0_12 = arith.constant 0 : index
    %c0_13 = arith.constant 0 : index
    %41 = vector.load %arg3[%40, %c0_11, %c0_12, %c0_13] : memref<1x4x16x16xf32, #tpu.memory_space<vmem>>, vector<1x1x16x16xf32>
    %42 = vector.shape_cast %41 : vector<1x1x16x16xf32> to vector<16x16xf32>
    %43 = vector.shape_cast %39 : vector<16x16xf32> to vector<1x1x16x16xf32>
    tpu.vector_store %arg3[%40, %c0_11, %c0_12, %c0_13], %43 {strides = array<i32>} : memref<1x4x16x16xf32, #tpu.memory_space<vmem>>, vector<1x1x16x16xf32>,
    %44 = vector.extract_strided_slice %37 {offsets = [16, 0], sizes = [16, 16], strides = [1, 1]} : vector<64x16xf32> to vector<16x16xf32>
    %cst_14 = arith.constant dense<0.000000e+00> : vector<16x16xf32>
    %45 = tpu.matmul %32, %44, %cst_14 {dimension_numbers = #tpu.dot_dimension_numbers<[1], [0], [0], [1], [0, 0, 1, 1], [], []>} : vector<16x16xf32>, vector<16x16xf32>, vector<16x16xf32> -> vector<16x16xf32>
    %46 = arith.index_cast %4 : i32 to index
    %c1 = arith.constant 1 : index
    %c0_15 = arith.constant 0 : index
    %c0_16 = arith.constant 0 : index
    %47 = vector.load %arg3[%46, %c1, %c0_15, %c0_16] : memref<1x4x16x16xf32, #tpu.memory_space<vmem>>, vector<1x1x16x16xf32>
    %48 = vector.shape_cast %47 : vector<1x1x16x16xf32> to vector<16x16xf32>
    %49 = vector.shape_cast %45 : vector<16x16xf32> to vector<1x1x16x16xf32>
    tpu.vector_store %arg3[%46, %c1, %c0_15, %c0_16], %49 {strides = array<i32>} : memref<1x4x16x16xf32, #tpu.memory_space<vmem>>, vector<1x1x16x16xf32>,
    %50 = vector.extract_strided_slice %37 {offsets = [32, 0], sizes = [16, 16], strides = [1, 1]} : vector<64x16xf32> to vector<16x16xf32>
    %cst_17 = arith.constant dense<0.000000e+00> : vector<16x16xf32>
    %51 = tpu.matmul %32, %50, %cst_17 {dimension_numbers = #tpu.dot_dimension_numbers<[1], [0], [0], [1], [0, 0, 1, 1], [], []>} : vector<16x16xf32>, vector<16x16xf32>, vector<16x16xf32> -> vector<16x16xf32>
    %52 = arith.index_cast %4 : i32 to index
    %c2 = arith.constant 2 : index
    %c0_18 = arith.constant 0 : index
    %c0_19 = arith.constant 0 : index
    %53 = vector.load %arg3[%52, %c2, %c0_18, %c0_19] : memref<1x4x16x16xf32, #tpu.memory_space<vmem>>, vector<1x1x16x16xf32>
    %54 = vector.shape_cast %53 : vector<1x1x16x16xf32> to vector<16x16xf32>
    %55 = vector.shape_cast %51 : vector<16x16xf32> to vector<1x1x16x16xf32>
    tpu.vector_store %arg3[%52, %c2, %c0_18, %c0_19], %55 {strides = array<i32>} : memref<1x4x16x16xf32, #tpu.memory_space<vmem>>, vector<1x1x16x16xf32>,
    %56 = vector.extract_strided_slice %37 {offsets = [48, 0], sizes = [16, 16], strides = [1, 1]} : vector<64x16xf32> to vector<16x16xf32>
    %cst_20 = arith.constant dense<0.000000e+00> : vector<16x16xf32>
    %57 = tpu.matmul %32, %56, %cst_20 {dimension_numbers = #tpu.dot_dimension_numbers<[1], [0], [0], [1], [0, 0, 1, 1], [], []>} : vector<16x16xf32>, vector<16x16xf32>, vector<16x16xf32> -> vector<16x16xf32>
    %58 = arith.index_cast %4 : i32 to index
    %c3 = arith.constant 3 : index
    %c0_21 = arith.constant 0 : index
    %c0_22 = arith.constant 0 : index
    %59 = vector.load %arg3[%58, %c3, %c0_21, %c0_22] : memref<1x4x16x16xf32, #tpu.memory_space<vmem>>, vector<1x1x16x16xf32>
    %60 = vector.shape_cast %59 : vector<1x1x16x16xf32> to vector<16x16xf32>
    %61 = vector.shape_cast %57 : vector<16x16xf32> to vector<1x1x16x16xf32>
    tpu.vector_store %arg3[%58, %c3, %c0_21, %c0_22], %61 {strides = array<i32>} : memref<1x4x16x16xf32, #tpu.memory_space<vmem>>, vector<1x1x16x16xf32>,
    %c1_i32_23 = arith.constant 1 : i32
    return
  }
  func.func @transform_0(%arg0: i32, %arg1: memref<4xi32, #tpu.memory_space<smem>>) -> (i32, i32, i32, i32) {
    %c0_i32 = arith.constant 0 : i32
    %c0_i32_0 = arith.constant 0 : i32
    %c0_i32_1 = arith.constant 0 : i32
    %c0_i32_2 = arith.constant 0 : i32
    return %arg0, %c0_i32, %c0_i32_0, %c0_i32_1 : i32, i32, i32, i32
  }
  func.func @transform_1(%arg0: i32, %arg1: memref<4xi32, #tpu.memory_space<smem>>) -> (i32, i32, i32, i32) {
    %c0_i32 = arith.constant 0 : i32
    %c0_i32_0 = arith.constant 0 : i32
    %c0_i32_1 = arith.constant 0 : i32
    %c0_i32_2 = arith.constant 0 : i32
    return %arg0, %c0_i32, %c0_i32_0, %c0_i32_1 : i32, i32, i32, i32
  }
}

</mosaic_0001>

<llo_original>
// kernel: tpu_custom_call.1
$region0: #{tpu_custom_call.1}
  #allocation0 [shape = 'u32[]', space=smem, size = 0x4, offset = 0x4, fixed_abs, tag = 'smem constant byte address 0x4 - core index']
  #allocation1 [shape = 'u32[144,128]{1,0:T(1,128)}', space=vmem, size = 0x12000, scoped, tag = 'internal scratch']
  #allocation2 [shape = 's32[1]{0}', space=sflag, size = 0x4, scoped, tag = 'scoped memory for tpu_custom_call.1']
  #allocation3 [shape = 'u8[512]{0}', space=smem, size = 0x200, scoped, tag = 'prefetched SMEM operand 0']
  %s0 = inlined_call_operand.hbm [shape: s32[4], index: 0, kind: input, shape index: {}]
  %s1 = inlined_call_operand.hbm [shape: f32[2,4,16,16], index: 1, kind: input, shape index: {}]
  %s2 = inlined_call_operand.hbm [shape: f32[2,4,16,16], index: 2, kind: output, shape index: {}]
  %s3 = sld [smem:[#allocation0]]
  $region41: #{tpu_custom_call.1} parent=0
    _
  %s5 = ssub.s32 1, %s3
  %s6 = scalar_select 0, %s5, %s3
  %8 = dma.hbm_to_smem %s0, 16, [#allocation3], [#allocation2]
  %9 = dma.done [#allocation2], 16
  %10 = sfence
  $region1: #{tpu_custom_call.1} parent=0
    #allocation4 [shape = 'u8[65536]{0}', space=vmem, size = 0x10000, scoped, tag = 'input window, operand 1']
    #allocation5 [shape = 's32[2]{0}', space=sflag, size = 0x8, scoped, tag = 'scoped memory for tpu_custom_call.1']
    #allocation6 [shape = 's32[2]{0}', space=sflag, size = 0x8, scoped, tag = 'scoped memory for tpu_custom_call.1']
    #allocation7 [shape = 'u8[65536]{0}', space=vmem, size = 0x10000, scoped, tag = 'output window, operand 0']
    %11 = vsyncpa [#allocation5], 0
    %s12 = scalar_lea.sflag [#allocation5], 1
    %13 = vsyncpa %s12, 0
    %14 = vsyncpa [#allocation6], 0
    %s15 = scalar_lea.sflag [#allocation6], 1
    %16 = vsyncpa %s15, 0
    loop: start=0, step=1, limit=4
    $region2: #{tpu_custom_call.1} parent=1 // loop_pre_header
      _
    $region3: #{tpu_custom_call.1} parent=1 // loop_header
      %s18 = sphi 0, %s22
      %p19 = scmp.ge.s32.totalorder %s18, 4
      %s28 = sphi 0, %s30
      %s31 = sphi 0, %s28
      %s32 = sphi 0, %s31
      %s48 = sphi 0, %s32
      %s54 = sphi 0, %s56
      %s57 = sphi 0, %s54
      %s58 = sphi 0, %s57
      %s74 = sphi 0, %s58
    $region4: #{tpu_custom_call.1} parent=1 // loop_header_branch
      %21 = sbr.rel (%p19) target = $region8
    $region5: #{tpu_custom_call.1} parent=1 // loop_body
      %s23 = ssub.s32 %s18, 1
      %s24 = ssub.s32 %s18, 2
      %s25 = sadd.s32 %s18, 1
      %s26 = ssub.s32 %s18, %s25
      %p27 = scmp.eq.s32.totalorder %s26, 0
      %s29 = sadd.s32 %s28, 1
      %s30 = scalar_select %p27, %s28, %s29
      %p33 = pneg %p27
      %p34 = scmp.eq.s32.totalorder %s18, 1
      %p35 = por %p33, %p34
      %p36 = scmp.ne.s32.totalorder %s28, %s31
      %p37 = scmp.eq.s32.totalorder %s18, 0
      %p38 = por %p36, %p37
      %p39 = scmp.ne.s32.totalorder %s28, %s31
      %p40 = scmp.eq.s32.totalorder %s23, 1
      %p41 = por %p39, %p40
      %p42 = scmp.ne.s32.totalorder %s31, %s32
      %p43 = scmp.eq.s32.totalorder %s23, 0
      %p44 = por %p42, %p43
      %p45 = scmp.ne.s32.totalorder %s31, %s32
      %p46 = scmp.eq.s32.totalorder %s24, 1
      %p47 = por %p45, %p46
      %p49 = scmp.ne.s32.totalorder %s32, %s48
      %p50 = scmp.eq.s32.totalorder %s24, 0
      %p51 = por %p49, %p50
      %s52 = ssub.s32 %s18, %s25
      %p53 = scmp.eq.s32.totalorder %s52, 0
      %s55 = sadd.s32 %s54, 1
      %s56 = scalar_select %p53, %s54, %s55
      %p59 = pneg %p53
      %p60 = scmp.eq.s32.totalorder %s18, 1
      %p61 = por %p59, %p60
      %p62 = scmp.ne.s32.totalorder %s54, %s57
      %p63 = scmp.eq.s32.totalorder %s18, 0
      %p64 = por %p62, %p63
      %p65 = scmp.ne.s32.totalorder %s54, %s57
      %p66 = scmp.eq.s32.totalorder %s23, 1
      %p67 = por %p65, %p66
      %p68 = scmp.ne.s32.totalorder %s57, %s58
      %p69 = scmp.eq.s32.totalorder %s23, 0
      %p70 = por %p68, %p69
      %p71 = scmp.ne.s32.totalorder %s57, %s58
      %p72 = scmp.eq.s32.totalorder %s24, 1
      %p73 = por %p71, %p72
      %p75 = scmp.ne.s32.totalorder %s58, %s74
      %p76 = scmp.eq.s32.totalorder %s24, 0
      %p77 = por %p75, %p76
      %p78 = scmp.le.s32.totalorder 1, %s18
      %p79 = scmp.lt.s32.totalorder %s18, 3
      %p80 = pnand %p78, %p79
      %p81 = pneg %p80
      // Predicated region
      $region9: #{tpu_custom_call.1} parent=5 // pred_check
        _
      $region10: #{tpu_custom_call.1} parent=5 // pred_check_branch
        %83 = sbr.rel (%p80) target = $region12
      $region11: #{tpu_custom_call.1} parent=5 // pred_region
        %s84 = ssub.s32 %s18, 1
      $region12: #{tpu_custom_call.1} parent=5 // pred_fallthru
        _
      %p85 = scmp.lt.s32.totalorder %s18, 2
      // Predicated region
      $region13: #{tpu_custom_call.1} parent=5 // pred_check
        %p86 = pneg %p85
      $region14: #{tpu_custom_call.1} parent=5 // pred_check_branch
        %88 = sbr.rel (%p86) target = $region16
      $region15: #{tpu_custom_call.1} parent=5 // pred_region
        // Predicated region
        $region17: #{tpu_custom_call.1} parent=15 // pred_check
          %p89 = pneg %p38
        $region18: #{tpu_custom_call.1} parent=15 // pred_check_branch
          %91 = sbr.rel (%p89) target = $region20
        $region19: #{tpu_custom_call.1} parent=15 // pred_region
          %s92 = sand.u32 %s28, 1
          %s93 = scalar_lea.sflag [#allocation5], %s92
          %s94 = sand.u32 %s28, 1
          %s95 = smul.addr %s94, 64
          %s96 = scalar_lea.vmem [#allocation4], %s95
          %s98 = ssub.s32 1024, 1024
          %99 = vsyncadd %s93, %s98
          %s100 = smul.addr %s18, 8
          %s101 = smul.addr %s100, 128
          %s102 = scalar_lea.hbm %s1, %s101
          %s103 = sshll.u32 %s96, 4
          %s104 = int_to_ptr.vmem [resolvable:$true] %s103
          %109 = dma.hbm_to_vmem [thread:$0]  %s102, 1024, %s104, %s93, 128, 128, 8
        $region20: #{tpu_custom_call.1} parent=15 // pred_fallthru
          _
      $region16: #{tpu_custom_call.1} parent=5 // pred_fallthru
        _
      %p110 = scmp.le.s32.totalorder 1, %s18
      %p111 = scmp.lt.s32.totalorder %s18, 3
      %p112 = pnand %p110, %p111
      %p113 = pneg %p112
      // Predicated region
      $region21: #{tpu_custom_call.1} parent=5 // pred_check
        _
      $region22: #{tpu_custom_call.1} parent=5 // pred_check_branch
        %115 = sbr.rel (%p112) target = $region24
      $region23: #{tpu_custom_call.1} parent=5 // pred_region
        %s116 = ssub.s32 %s18, 1
        %s117 = sand.u32 %s31, 1
        %s118 = scalar_lea.sflag [#allocation5], %s117
        %s119 = sand.u32 %s31, 1
        %s120 = smul.addr %s119, 64
        %s121 = scalar_lea.vmem [#allocation4], %s120
        // Predicated region
        $region25: #{tpu_custom_call.1} parent=23 // pred_check
          %p122 = pneg %p44
        $region26: #{tpu_custom_call.1} parent=23 // pred_check_branch
          %124 = sbr.rel (%p122) target = $region28
        $region27: #{tpu_custom_call.1} parent=23 // pred_region
          %125 = dma.done %s118, 1024
        $region28: #{tpu_custom_call.1} parent=23 // pred_fallthru
          _
        %s126 = sand.u32 %s31, 1
        %s127 = scalar_lea.sflag [#allocation5], %s126
        %s128 = sand.u32 %s31, 1
        %s129 = smul.addr %s128, 64
        %s130 = scalar_lea.vmem [#allocation4], %s129
        %p131 = pneg %p44
        %p132 = pneg %p41
        %p133 = pneg %p70
        %p134 = pneg %p67
        %s135 = sand.u32 %s57, 1
        %s136 = scalar_lea.sflag [#allocation6], %s135
        %s137 = sand.u32 %s57, 1
        %s138 = smul.addr %s137, 64
        %s139 = scalar_lea.vmem [#allocation7], %s138
        %v140 = vlaneseq
        %v141 = vshrl.u32 %v140, 7
        %v142 = vadd.s32 %v141, 8
        %v143 = vlaneseq
        %v144 = vand.u32 %v143, 127
        %s145 = smul.u32 %s23, 2
        %s146 = sld [smem:[#allocation3 + %s145]]
        %s147 = sadd.s32 %s145, 1
        %s148 = sld [smem:[#allocation3 + %s147]]
        %s149 = ssub.s32 %s146, 4
        %v150 = vstv %s149
        %v151 = vadd.s32 %v144, %v150
        %vm152 = vcmp.gt.s32.totalorder %v151, 0
        %v153 = vsel %vm152, %v151, 0
        %vm154 = vcmp.lt.s32.totalorder %v153, 15
        %v155 = vsel %vm154, %v153, 15
        %vm156 = vcmp.eq.s32.totalorder %v141, %v155
        %vm157 = vcmp.eq.s32.totalorder %v142, %v155
        %v158 = vsel %vm156, 1, 0
        %v159 = vsel %vm157, 1, 0
        %v160 = vcvt.s32.f32 %v158
        %v161 = vcvt.s32.f32 %v159
        %s162 = ssub.s32 %s148, 4
        %v163 = vstv %s162
        %v164 = vadd.s32 %v141, %v163
        %v165 = vadd.s32 %v142, %v163
        %vm166 = vcmp.gt.s32.totalorder %v164, 0
        %v167 = vsel %vm166, %v164, 0
        %vm168 = vcmp.gt.s32.totalorder %v165, 0
        %v169 = vsel %vm168, %v165, 0
        %vm170 = vcmp.lt.s32.totalorder %v167, 15
        %v171 = vsel %vm170, %v167, 15
        %vm172 = vcmp.lt.s32.totalorder %v169, 15
        %v173 = vsel %vm172, %v169, 15
        %vm174 = vcmp.eq.s32.totalorder %v144, %v171
        %vm175 = vcmp.eq.s32.totalorder %v144, %v173
        %v176 = vsel %vm174, 1, 0
        %v177 = vsel %vm175, 1, 0
        %v178 = vcvt.s32.f32 %v176
        %v179 = vcvt.s32.f32 %v177
        %v180 = vld [vmem:[%s121] sm:$0xff]
        %v181 = vld [vmem:[%s121 + $0x8] sm:$0xff]
        %v182 = vld [vmem:[%s121 + $0x10] sm:$0xff]
        %v183 = vld [vmem:[%s121 + $0x18] sm:$0xff]
        %v184 = vld [vmem:[%s121 + $0x20] sm:$0xff]
        %v185 = vld [vmem:[%s121 + $0x28] sm:$0xff]
        %v186 = vld [vmem:[%s121 + $0x30] sm:$0xff]
        %v187 = vld [vmem:[%s121 + $0x38] sm:$0xff]
        %vm188 = vcmask 130048
        %v190 = vsel %vm188, %v180, 0
        %v193 = vsel %vm188, %v181, 0
        %v196 = vsel %vm188, %v182, 0
        %v199 = vsel %vm188, %v183, 0
        %v202 = vsel %vm188, %v184, 0
        %v205 = vsel %vm188, %v185, 0
        %v208 = vsel %vm188, %v186, 0
        %v211 = vsel %vm188, %v187, 0
        %213 = vmatprep.subr.mxu0 0.0
        %214 = vmatpush1.msra.mxu0 0.0
        %215 = vmatprep.subr.mxu0 0.0
        %216 = vmatpush1.msra.mxu0 0.0
        %217 = vmatprep.subr.mxu0 0.0
        %218 = vmatpush1.msra.mxu0 0.0
        %219 = vmatprep.subr.mxu0 0.0
        %220 = vmatpush1.msra.mxu0 0.0
        %221 = vmatprep.subr.mxu0 0.0
        %222 = vmatpush1.msra.mxu0 0.0
        %223 = vmatprep.subr.mxu0 0.0
        %224 = vmatpush1.msra.mxu0 0.0
        %225 = vmatprep.subr.mxu0 0.0
        %226 = vmatpush1.msra.mxu0 0.0
        %227 = vmatprep.subr.mxu0 0.0
        %228 = vmatpush1.msra.mxu0 0.0
        %229 = vmatprep.subr.mxu0 0.0
        %230 = vmatpush1.msra.mxu0 0.0
        %231 = vmatprep.subr.mxu0 0.0
        %232 = vmatpush1.msra.mxu0 0.0
        %233 = vmatprep.subr.mxu0 0.0
        %234 = vmatpush1.msra.mxu0 0.0
        %235 = vmatprep.subr.mxu0 0.0
        %236 = vmatpush1.msra.mxu0 0.0
        %237 = vmatprep.subr.mxu0 0.0
        %238 = vmatpush1.msra.mxu0 0.0
        %239 = vmatprep.subr.mxu0 0.0
        %240 = vmatpush1.msra.mxu0 0.0
        %241 = vmatprep.subr.mxu0 0.0
        %242 = vmatpush1.msra.mxu0 %v161
        %243 = vmatprep.subr.mxu0 0.0
        %244 = vmatpush1.msra.mxu0 %v160
        %245 = vmatprep.subr.mxu0 0.0
        %246 = vmatpush2.msra.mxu0 0.0
        %247 = vmatprep.subr.mxu0 0.0
        %248 = vmatpush2.msra.mxu0 0.0
        %249 = vmatprep.subr.mxu0 0.0
        %250 = vmatpush2.msra.mxu0 0.0
        %251 = vmatprep.subr.mxu0 0.0
        %252 = vmatpush2.msra.mxu0 0.0
        %253 = vmatprep.subr.mxu0 0.0
        %254 = vmatpush2.msra.mxu0 0.0
        %255 = vmatprep.subr.mxu0 0.0
        %256 = vmatpush2.msra.mxu0 0.0
        %257 = vmatprep.subr.mxu0 0.0
        %258 = vmatpush2.msra.mxu0 0.0
        %259 = vmatprep.subr.mxu0 0.0
        %260 = vmatpush2.msra.mxu0 0.0
        %261 = vmatprep.subr.mxu0 0.0
        %262 = vmatpush2.msra.mxu0 0.0
        %263 = vmatprep.subr.mxu0 0.0
        %264 = vmatpush2.msra.mxu0 0.0
        %265 = vmatprep.subr.mxu0 0.0
        %266 = vmatpush2.msra.mxu0 0.0
        %267 = vmatprep.subr.mxu0 0.0
        %268 = vmatpush2.msra.mxu0 0.0
        %269 = vmatprep.subr.mxu0 0.0
        %270 = vmatpush2.msra.mxu0 0.0
        %271 = vmatprep.subr.mxu0 0.0
        %272 = vmatpush2.msra.mxu0 0.0
        %273 = vmatprep.subr.mxu0 0.0
        %274 = vmatpush2.msra.mxu0 0.0
        %275 = vmatprep.subr.mxu0 0.0
        %276 = vmatpush2.msra.mxu0 0.0
        %277 = vmatprep.mubr.f32.mxu0 0.0
        %278 = vmatmul.mubr.f32.gmra.mxu0 %v190
        %v279 = vpop.f32.mrf.mxu0
        %v280 = vadd.f32 0.0, %v279
        %v281 = vpop.f32.mrf.mxu0
        %282 = vmatprep.mubr.f32.mxu0 0.0
        %283 = vmatmul.mubr.f32.gmra.mxu0 %v193
        %v284 = vpop.f32.mrf.mxu0
        %v285 = vadd.f32 0.0, %v284
        %v286 = vpop.f32.mrf.mxu0
        %287 = vmatprep.mubr.f32.mxu0 0.0
        %288 = vmatmul.mubr.f32.gmra.mxu0 %v196
        %v289 = vpop.f32.mrf.mxu0
        %v290 = vadd.f32 0.0, %v289
        %v291 = vpop.f32.mrf.mxu0
        %292 = vmatprep.mubr.f32.mxu0 0.0
        %293 = vmatmul.mubr.f32.gmra.mxu0 %v199
        %v294 = vpop.f32.mrf.mxu0
        %v295 = vadd.f32 0.0, %v294
        %v296 = vpop.f32.mrf.mxu0
        %297 = vmatprep.mubr.f32.mxu0 0.0
        %298 = vmatmul.mubr.f32.gmra.mxu0 %v202
        %v299 = vpop.f32.mrf.mxu0
        %v300 = vadd.f32 0.0, %v299
        %v301 = vpop.f32.mrf.mxu0
        %302 = vmatprep.mubr.f32.mxu0 0.0
        %303 = vmatmul.mubr.f32.gmra.mxu0 %v205
        %v304 = vpop.f32.mrf.mxu0
        %v305 = vadd.f32 0.0, %v304
        %v306 = vpop.f32.mrf.mxu0
        %307 = vmatprep.mubr.f32.mxu0 0.0
        %308 = vmatmul.mubr.f32.gmra.mxu0 %v208
        %v309 = vpop.f32.mrf.mxu0
        %v310 = vadd.f32 0.0, %v309
        %v311 = vpop.f32.mrf.mxu0
        %312 = vmatprep.mubr.f32.mxu0 0.0
        %313 = vmatmul.mubr.f32.gmra.mxu0 %v211
        %v314 = vpop.f32.mrf.mxu0
        %v315 = vadd.f32 0.0, %v314
        %v316 = vpop.f32.mrf.mxu0
        %317 = vdwg.mxu0
        %v319 = vsel %vm188, %v178, 0
        %v322 = vsel %vm188, %v179, 0
        %324 = vmatprep.subr.mxu0 0.0
        %325 = vmatpush1.msra.mxu0 0.0
        %326 = vmatprep.subr.mxu0 0.0
        %327 = vmatpush1.msra.mxu0 0.0
        %328 = vmatprep.subr.mxu0 0.0
        %329 = vmatpush1.msra.mxu0 0.0
        %330 = vmatprep.subr.mxu0 0.0
        %331 = vmatpush1.msra.mxu0 0.0
        %332 = vmatprep.subr.mxu0 0.0
        %333 = vmatpush1.msra.mxu0 0.0
        %334 = vmatprep.subr.mxu0 0.0
        %335 = vmatpush1.msra.mxu0 0.0
        %336 = vmatprep.subr.mxu0 0.0
        %337 = vmatpush1.msra.mxu0 0.0
        %338 = vmatprep.subr.mxu0 0.0
        %339 = vmatpush1.msra.mxu0 0.0
        %340 = vmatprep.subr.mxu0 0.0
        %341 = vmatpush1.msra.mxu0 0.0
        %342 = vmatprep.subr.mxu0 0.0
        %343 = vmatpush1.msra.mxu0 0.0
        %344 = vmatprep.subr.mxu0 0.0
        %345 = vmatpush1.msra.mxu0 0.0
        %346 = vmatprep.subr.mxu0 0.0
        %347 = vmatpush1.msra.mxu0 0.0
        %348 = vmatprep.subr.mxu0 0.0
        %349 = vmatpush1.msra.mxu0 0.0
        %350 = vmatprep.subr.mxu0 0.0
        %351 = vmatpush1.msra.mxu0 0.0
        %352 = vmatprep.subr.mxu0 0.0
        %353 = vmatpush1.msra.mxu0 %v285
        %354 = vmatprep.subr.mxu0 0.0
        %355 = vmatpush1.msra.mxu0 %v280
        %356 = vmatprep.subr.mxu0 0.0
        %357 = vmatpush2.msra.mxu0 0.0
        %358 = vmatprep.subr.mxu0 0.0
        %359 = vmatpush2.msra.mxu0 0.0
        %360 = vmatprep.subr.mxu0 0.0
        %361 = vmatpush2.msra.mxu0 0.0
        %362 = vmatprep.subr.mxu0 0.0
        %363 = vmatpush2.msra.mxu0 0.0
        %364 = vmatprep.subr.mxu0 0.0
        %365 = vmatpush2.msra.mxu0 0.0
        %366 = vmatprep.subr.mxu0 0.0
        %367 = vmatpush2.msra.mxu0 0.0
        %368 = vmatprep.subr.mxu0 0.0
        %369 = vmatpush2.msra.mxu0 0.0
        %370 = vmatprep.subr.mxu0 0.0
        %371 = vmatpush2.msra.mxu0 0.0
        %372 = vmatprep.subr.mxu0 0.0
        %373 = vmatpush2.msra.mxu0 0.0
        %374 = vmatprep.subr.mxu0 0.0
        %375 = vmatpush2.msra.mxu0 0.0
        %376 = vmatprep.subr.mxu0 0.0
        %377 = vmatpush2.msra.mxu0 0.0
        %378 = vmatprep.subr.mxu0 0.0
        %379 = vmatpush2.msra.mxu0 0.0
        %380 = vmatprep.subr.mxu0 0.0
        %381 = vmatpush2.msra.mxu0 0.0
        %382 = vmatprep.subr.mxu0 0.0
        %383 = vmatpush2.msra.mxu0 0.0
        %384 = vmatprep.subr.mxu0 0.0
        %385 = vmatpush2.msra.mxu0 0.0
        %386 = vmatprep.subr.mxu0 0.0
        %387 = vmatpush2.msra.mxu0 0.0
        %388 = vmatprep.mubr.f32.mxu0 0.0
        %389 = vmatmul.mubr.f32.gmra.mxu0 %v319
        %v390 = vpop.f32.mrf.mxu0
        %v391 = vadd.f32 0.0, %v390
        %v392 = vpop.f32.mrf.mxu0
        %393 = vmatprep.mubr.f32.mxu0 0.0
        %394 = vmatmul.mubr.f32.gmra.mxu0 %v322
        %v395 = vpop.f32.mrf.mxu0
        %v396 = vadd.f32 0.0, %v395
        %v397 = vpop.f32.mrf.mxu0
        %398 = vdwg.mxu0
        %399 = vst.msk [vmem:[%s139] sm:$0xff] %vm188, %v391
        %400 = vst.msk [vmem:[%s139 + $0x8] sm:$0xff] %vm188, %v396
        %401 = vmatprep.subr.mxu0 0.0
        %402 = vmatpush1.msra.mxu0 0.0
        %403 = vmatprep.subr.mxu0 0.0
        %404 = vmatpush1.msra.mxu0 0.0
        %405 = vmatprep.subr.mxu0 0.0
        %406 = vmatpush1.msra.mxu0 0.0
        %407 = vmatprep.subr.mxu0 0.0
        %408 = vmatpush1.msra.mxu0 0.0
        %409 = vmatprep.subr.mxu0 0.0
        %410 = vmatpush1.msra.mxu0 0.0
        %411 = vmatprep.subr.mxu0 0.0
        %412 = vmatpush1.msra.mxu0 0.0
        %413 = vmatprep.subr.mxu0 0.0
        %414 = vmatpush1.msra.mxu0 0.0
        %415 = vmatprep.subr.mxu0 0.0
        %416 = vmatpush1.msra.mxu0 0.0
        %417 = vmatprep.subr.mxu0 0.0
        %418 = vmatpush1.msra.mxu0 0.0
        %419 = vmatprep.subr.mxu0 0.0
        %420 = vmatpush1.msra.mxu0 0.0
        %421 = vmatprep.subr.mxu0 0.0
        %422 = vmatpush1.msra.mxu0 0.0
        %423 = vmatprep.subr.mxu0 0.0
        %424 = vmatpush1.msra.mxu0 0.0
        %425 = vmatprep.subr.mxu0 0.0
        %426 = vmatpush1.msra.mxu0 0.0
        %427 = vmatprep.subr.mxu0 0.0
        %428 = vmatpush1.msra.mxu0 0.0
        %429 = vmatprep.subr.mxu0 0.0
        %430 = vmatpush1.msra.mxu0 %v295
        %431 = vmatprep.subr.mxu0 0.0
        %432 = vmatpush1.msra.mxu0 %v290
        %433 = vmatprep.subr.mxu0 0.0
        %434 = vmatpush2.msra.mxu0 0.0
        %435 = vmatprep.subr.mxu0 0.0
        %436 = vmatpush2.msra.mxu0 0.0
        %437 = vmatprep.subr.mxu0 0.0
        %438 = vmatpush2.msra.mxu0 0.0
        %439 = vmatprep.subr.mxu0 0.0
        %440 = vmatpush2.msra.mxu0 0.0
        %441 = vmatprep.subr.mxu0 0.0
        %442 = vmatpush2.msra.mxu0 0.0
        %443 = vmatprep.subr.mxu0 0.0
        %444 = vmatpush2.msra.mxu0 0.0
        %445 = vmatprep.subr.mxu0 0.0
        %446 = vmatpush2.msra.mxu0 0.0
        %447 = vmatprep.subr.mxu0 0.0
        %448 = vmatpush2.msra.mxu0 0.0
        %449 = vmatprep.subr.mxu0 0.0
        %450 = vmatpush2.msra.mxu0 0.0
        %451 = vmatprep.subr.mxu0 0.0
        %452 = vmatpush2.msra.mxu0 0.0
        %453 = vmatprep.subr.mxu0 0.0
        %454 = vmatpush2.msra.mxu0 0.0
        %455 = vmatprep.subr.mxu0 0.0
        %456 = vmatpush2.msra.mxu0 0.0
        %457 = vmatprep.subr.mxu0 0.0
        %458 = vmatpush2.msra.mxu0 0.0
        %459 = vmatprep.subr.mxu0 0.0
        %460 = vmatpush2.msra.mxu0 0.0
        %461 = vmatprep.subr.mxu0 0.0
        %462 = vmatpush2.msra.mxu0 0.0
        %463 = vmatprep.subr.mxu0 0.0
        %464 = vmatpush2.msra.mxu0 0.0
        %465 = vmatprep.mubr.f32.mxu0 0.0
        %466 = vmatmul.mubr.f32.gmra.mxu0 %v319
        %v467 = vpop.f32.mrf.mxu0
        %v468 = vadd.f32 0.0, %v467
        %v469 = vpop.f32.mrf.mxu0
        %470 = vmatprep.mubr.f32.mxu0 0.0
        %471 = vmatmul.mubr.f32.gmra.mxu0 %v322
        %v472 = vpop.f32.mrf.mxu0
        %v473 = vadd.f32 0.0, %v472
        %v474 = vpop.f32.mrf.mxu0
        %475 = vdwg.mxu0
        %s476 = scalar_lea.vmem %s139, 16 [#allocation7]
        %477 = vst.msk [vmem:[%s476] sm:$0xff] %vm188, %v468
        %478 = vst.msk [vmem:[%s476 + $0x8] sm:$0xff] %vm188, %v473
        %479 = vmatprep.subr.mxu0 0.0
        %480 = vmatpush1.msra.mxu0 0.0
        %481 = vmatprep.subr.mxu0 0.0
        %482 = vmatpush1.msra.mxu0 0.0
        %483 = vmatprep.subr.mxu0 0.0
        %484 = vmatpush1.msra.mxu0 0.0
        %485 = vmatprep.subr.mxu0 0.0
        %486 = vmatpush1.msra.mxu0 0.0
        %487 = vmatprep.subr.mxu0 0.0
        %488 = vmatpush1.msra.mxu0 0.0
        %489 = vmatprep.subr.mxu0 0.0
        %490 = vmatpush1.msra.mxu0 0.0
        %491 = vmatprep.subr.mxu0 0.0
        %492 = vmatpush1.msra.mxu0 0.0
        %493 = vmatprep.subr.mxu0 0.0
        %494 = vmatpush1.msra.mxu0 0.0
        %495 = vmatprep.subr.mxu0 0.0
        %496 = vmatpush1.msra.mxu0 0.0
        %497 = vmatprep.subr.mxu0 0.0
        %498 = vmatpush1.msra.mxu0 0.0
        %499 = vmatprep.subr.mxu0 0.0
        %500 = vmatpush1.msra.mxu0 0.0
        %501 = vmatprep.subr.mxu0 0.0
        %502 = vmatpush1.msra.mxu0 0.0
        %503 = vmatprep.subr.mxu0 0.0
        %504 = vmatpush1.msra.mxu0 0.0
        %505 = vmatprep.subr.mxu0 0.0
        %506 = vmatpush1.msra.mxu0 0.0
        %507 = vmatprep.subr.mxu0 0.0
        %508 = vmatpush1.msra.mxu0 %v305
        %509 = vmatprep.subr.mxu0 0.0
        %510 = vmatpush1.msra.mxu0 %v300
        %511 = vmatprep.subr.mxu0 0.0
        %512 = vmatpush2.msra.mxu0 0.0
        %513 = vmatprep.subr.mxu0 0.0
        %514 = vmatpush2.msra.mxu0 0.0
        %515 = vmatprep.subr.mxu0 0.0
        %516 = vmatpush2.msra.mxu0 0.0
        %517 = vmatprep.subr.mxu0 0.0
        %518 = vmatpush2.msra.mxu0 0.0
        %519 = vmatprep.subr.mxu0 0.0
        %520 = vmatpush2.msra.mxu0 0.0
        %521 = vmatprep.subr.mxu0 0.0
        %522 = vmatpush2.msra.mxu0 0.0
        %523 = vmatprep.subr.mxu0 0.0
        %524 = vmatpush2.msra.mxu0 0.0
        %525 = vmatprep.subr.mxu0 0.0
        %526 = vmatpush2.msra.mxu0 0.0
        %527 = vmatprep.subr.mxu0 0.0
        %528 = vmatpush2.msra.mxu0 0.0
        %529 = vmatprep.subr.mxu0 0.0
        %530 = vmatpush2.msra.mxu0 0.0
        %531 = vmatprep.subr.mxu0 0.0
        %532 = vmatpush2.msra.mxu0 0.0
        %533 = vmatprep.subr.mxu0 0.0
        %534 = vmatpush2.msra.mxu0 0.0
        %535 = vmatprep.subr.mxu0 0.0
        %536 = vmatpush2.msra.mxu0 0.0
        %537 = vmatprep.subr.mxu0 0.0
        %538 = vmatpush2.msra.mxu0 0.0
        %539 = vmatprep.subr.mxu0 0.0
        %540 = vmatpush2.msra.mxu0 0.0
        %541 = vmatprep.subr.mxu0 0.0
        %542 = vmatpush2.msra.mxu0 0.0
        %543 = vmatprep.mubr.f32.mxu0 0.0
        %544 = vmatmul.mubr.f32.gmra.mxu0 %v319
        %v545 = vpop.f32.mrf.mxu0
        %v546 = vadd.f32 0.0, %v545
        %v547 = vpop.f32.mrf.mxu0
        %548 = vmatprep.mubr.f32.mxu0 0.0
        %549 = vmatmul.mubr.f32.gmra.mxu0 %v322
        %v550 = vpop.f32.mrf.mxu0
        %v551 = vadd.f32 0.0, %v550
        %v552 = vpop.f32.mrf.mxu0
        %553 = vdwg.mxu0
        %s554 = scalar_lea.vmem %s139, 32 [#allocation7]
        %555 = vst.msk [vmem:[%s554] sm:$0xff] %vm188, %v546
        %556 = vst.msk [vmem:[%s554 + $0x8] sm:$0xff] %vm188, %v551
        %557 = vmatprep.subr.mxu0 0.0
        %558 = vmatpush1.msra.mxu0 0.0
        %559 = vmatprep.subr.mxu0 0.0
        %560 = vmatpush1.msra.mxu0 0.0
        %561 = vmatprep.subr.mxu0 0.0
        %562 = vmatpush1.msra.mxu0 0.0
        %563 = vmatprep.subr.mxu0 0.0
        %564 = vmatpush1.msra.mxu0 0.0
        %565 = vmatprep.subr.mxu0 0.0
        %566 = vmatpush1.msra.mxu0 0.0
        %567 = vmatprep.subr.mxu0 0.0
        %568 = vmatpush1.msra.mxu0 0.0
        %569 = vmatprep.subr.mxu0 0.0
        %570 = vmatpush1.msra.mxu0 0.0
        %571 = vmatprep.subr.mxu0 0.0
        %572 = vmatpush1.msra.mxu0 0.0
        %573 = vmatprep.subr.mxu0 0.0
        %574 = vmatpush1.msra.mxu0 0.0
        %575 = vmatprep.subr.mxu0 0.0
        %576 = vmatpush1.msra.mxu0 0.0
        %577 = vmatprep.subr.mxu0 0.0
        %578 = vmatpush1.msra.mxu0 0.0
        %579 = vmatprep.subr.mxu0 0.0
        %580 = vmatpush1.msra.mxu0 0.0
        %581 = vmatprep.subr.mxu0 0.0
        %582 = vmatpush1.msra.mxu0 0.0
        %583 = vmatprep.subr.mxu0 0.0
        %584 = vmatpush1.msra.mxu0 0.0
        %585 = vmatprep.subr.mxu0 0.0
        %586 = vmatpush1.msra.mxu0 %v315
        %587 = vmatprep.subr.mxu0 0.0
        %588 = vmatpush1.msra.mxu0 %v310
        %589 = vmatprep.subr.mxu0 0.0
        %590 = vmatpush2.msra.mxu0 0.0
        %591 = vmatprep.subr.mxu0 0.0
        %592 = vmatpush2.msra.mxu0 0.0
        %593 = vmatprep.subr.mxu0 0.0
        %594 = vmatpush2.msra.mxu0 0.0
        %595 = vmatprep.subr.mxu0 0.0
        %596 = vmatpush2.msra.mxu0 0.0
        %597 = vmatprep.subr.mxu0 0.0
        %598 = vmatpush2.msra.mxu0 0.0
        %599 = vmatprep.subr.mxu0 0.0
        %600 = vmatpush2.msra.mxu0 0.0
        %601 = vmatprep.subr.mxu0 0.0
        %602 = vmatpush2.msra.mxu0 0.0
        %603 = vmatprep.subr.mxu0 0.0
        %604 = vmatpush2.msra.mxu0 0.0
        %605 = vmatprep.subr.mxu0 0.0
        %606 = vmatpush2.msra.mxu0 0.0
        %607 = vmatprep.subr.mxu0 0.0
        %608 = vmatpush2.msra.mxu0 0.0
        %609 = vmatprep.subr.mxu0 0.0
        %610 = vmatpush2.msra.mxu0 0.0
        %611 = vmatprep.subr.mxu0 0.0
        %612 = vmatpush2.msra.mxu0 0.0
        %613 = vmatprep.subr.mxu0 0.0
        %614 = vmatpush2.msra.mxu0 0.0
        %615 = vmatprep.subr.mxu0 0.0
        %616 = vmatpush2.msra.mxu0 0.0
        %617 = vmatprep.subr.mxu0 0.0
        %618 = vmatpush2.msra.mxu0 0.0
        %619 = vmatprep.subr.mxu0 0.0
        %620 = vmatpush2.msra.mxu0 0.0
        %621 = vmatprep.mubr.f32.mxu0 0.0
        %622 = vmatmul.mubr.f32.gmra.mxu0 %v319
        %v623 = vpop.f32.mrf.mxu0
        %v624 = vadd.f32 0.0, %v623
        %v625 = vpop.f32.mrf.mxu0
        %626 = vmatprep.mubr.f32.mxu0 0.0
        %627 = vmatmul.mubr.f32.gmra.mxu0 %v322
        %v628 = vpop.f32.mrf.mxu0
        %v629 = vadd.f32 0.0, %v628
        %v630 = vpop.f32.mrf.mxu0
        %631 = vdwg.mxu0
        %s632 = scalar_lea.vmem %s139, 48 [#allocation7]
        %633 = vst.msk [vmem:[%s632] sm:$0xff] %vm188, %v624
        %634 = vst.msk [vmem:[%s632 + $0x8] sm:$0xff] %vm188, %v629
        %s635 = sand.u32 %s57, 1
        %s636 = scalar_lea.sflag [#allocation6], %s635
        %s637 = sand.u32 %s57, 1
        %s638 = smul.addr %s637, 64
        %s639 = scalar_lea.vmem [#allocation7], %s638
        // Predicated region
        $region29: #{tpu_custom_call.1} parent=23 // pred_check
          %p640 = pneg %p67
        $region30: #{tpu_custom_call.1} parent=23 // pred_check_branch
          %642 = sbr.rel (%p640) target = $region32
        $region31: #{tpu_custom_call.1} parent=23 // pred_region
          %s644 = ssub.s32 1024, 1024
          %645 = vsyncadd %s636, %s644
          %s646 = smul.addr %s23, 8
          %s647 = smul.addr %s646, 128
          %s648 = scalar_lea.hbm %s2, %s647
          %s649 = sshll.u32 %s639, 4
          %s650 = int_to_ptr.vmem [resolvable:$true] %s649
          %655 = dma.vmem_to_hbm [thread:$0]  %s650, 1024, %s648, %s636, 128, 128, 8
        $region32: #{tpu_custom_call.1} parent=23 // pred_fallthru
          _
      $region24: #{tpu_custom_call.1} parent=5 // pred_fallthru
        _
      %p656 = scmp.le.s32.totalorder 2, %s18
      // Predicated region
      $region33: #{tpu_custom_call.1} parent=5 // pred_check
        %p657 = pneg %p656
      $region34: #{tpu_custom_call.1} parent=5 // pred_check_branch
        %659 = sbr.rel (%p657) target = $region36
      $region35: #{tpu_custom_call.1} parent=5 // pred_region
        %s660 = ssub.s32 %s18, 2
        // Predicated region
        $region37: #{tpu_custom_call.1} parent=35 // pred_check
          %p661 = pneg %p73
        $region38: #{tpu_custom_call.1} parent=35 // pred_check_branch
          %663 = sbr.rel (%p661) target = $region40
        $region39: #{tpu_custom_call.1} parent=35 // pred_region
          %s664 = sand.u32 %s58, 1
          %s665 = scalar_lea.sflag [#allocation6], %s664
          %s666 = sand.u32 %s58, 1
          %s667 = smul.addr %s666, 64
          %s668 = scalar_lea.vmem [#allocation7], %s667
          %669 = dma.done %s665, 1024
        $region40: #{tpu_custom_call.1} parent=35 // pred_fallthru
          _
      $region36: #{tpu_custom_call.1} parent=5 // pred_fallthru
        _
    $region6: #{tpu_custom_call.1} parent=1 // loop_footer
      %s22 = sadd.s32 1, %s18
    $region7: #{tpu_custom_call.1} parent=1 // loop_footer_branch
      %17 = sbr.rel target = $region3
    $region8: #{tpu_custom_call.1} parent=1 // loop_exit
      _
    %670 = vsyncpa [#allocation5], 1
    %s671 = scalar_lea.sflag [#allocation5], 1
    %672 = vsyncpa %s671, 1
    %673 = vsyncpa [#allocation6], 1
    %s674 = scalar_lea.sflag [#allocation6], 1
    %675 = vsyncpa %s674, 1

</llo_original>
